<compile_context>
chip_gen: v7x
topology: tpu7x:2x2x1
jax: 0.10.0
libtpu: 0.0.40
codegen_flags: <defaults>
</compile_context>

<pallas_src>
import numpy as np
import jax
import jax.numpy as jnp
from jax.experimental import pallas as pl
from jax.experimental.pallas import tpu as pltpu


def _round_up(x, m):
    return ((x + m - 1) // m) * m


def _make_kernel(TB, C, B_actual):
    def kernel(base_ref, exp_ref, tgt_ref, params_ref,
               a_out_ref, d_out_ref,
               oh_scr, madj_scr, p_scr, wi_scr, vm_scr,
               plogp_scr, a_acc, d_acc):
        i = pl.program_id(0)          # batch-tile index ("parallel")
        e = pl.program_id(1)          # expert index ("arbitrary" reduction, innermost)

        inv_temp = params_ref[2:3, :]                               # (1, C)

        # ---- expert-invariant per-batch-tile precompute (once, at e == 0) ----
        @pl.when(e == 0)
        def _():
            tgt = tgt_ref[...]                                      # (TB, 1) int32
            col = jax.lax.broadcasted_iota(jnp.int32, (TB, C), 1)
            onehot = (col == tgt).astype(jnp.float32)               # (TB, C)
            oh_scr[...] = onehot
            madj_scr[...] = onehot * params_ref[0:1, :]             # onehot * (m*s)

            row = jax.lax.broadcasted_iota(jnp.int32, (TB, 1), 0)
            valid = ((i * TB + row) < B_actual).astype(jnp.float32)  # (TB, 1)
            vm_scr[...] = valid
            wi_scr[...] = valid * jnp.sum(onehot * params_ref[1:2, :],
                                          axis=1, keepdims=True)

            # softmax(base / T) path shared by every expert's KL term
            bs = base_ref[...].astype(jnp.float32) * inv_temp
            zb = bs - jnp.max(bs, axis=1, keepdims=True)
            eb = jnp.exp(zb)
            seb = jnp.sum(eb, axis=1, keepdims=True)                # (TB, 1)
            lse_b = jnp.log(seb)
            p = eb * pl.reciprocal(seb, approx=False)
            p_scr[...] = p
            # sum_rows valid * sum_c p*log_p  with  sum_c p*log_p = sum_c p*zb - lse_b
            plogp_scr[...] = jnp.sum(
                valid * (jnp.sum(p * zb, axis=1, keepdims=True) - lse_b)
            ).reshape(1, 1)

            a_acc[...] = jnp.zeros_like(a_acc)
            d_acc[...] = jnp.zeros_like(d_acc)

        # ---- per-expert work ----
        x = exp_ref[0].astype(jnp.float32)                          # (TB, C)
        onehot = oh_scr[...]
        valid = vm_scr[...]

        # margin cross entropy: final = x - onehot*(m[target]*s) (margin_adj hoisted)
        final = x - madj_scr[...]
        zf = final - jnp.max(final, axis=1, keepdims=True)
        lse_f = jnp.log(jnp.sum(jnp.exp(zf), axis=1, keepdims=True))
        nll = lse_f - jnp.sum(onehot * zf, axis=1, keepdims=True)   # (TB, 1)
        a_acc[...] = a_acc[...] + jnp.sum(wi_scr[...] * nll)

        # KL(log_softmax(x/T) || softmax(base/T)) numerator, without log_q:
        #   sum_c p*log_q = sum_c p*zs - lse_q
        xs = x * inv_temp
        zs = xs - jnp.max(xs, axis=1, keepdims=True)
        lse_q = jnp.log(jnp.sum(jnp.exp(zs), axis=1, keepdims=True))
        p = p_scr[...]
        plogq = jnp.sum(valid * (jnp.sum(p * zs, axis=1, keepdims=True) - lse_q))
        d_acc[...] = d_acc[...] + (plogp_scr[...] - plogq)

        # ---- write the per-tile partials exactly once, on the last expert ----
        @pl.when(e == pl.num_programs(1) - 1)
        def _():
            a_out_ref[...] = a_acc[...].reshape(1, 1, 1)
            d_out_ref[...] = d_acc[...].reshape(1, 1, 1)

    return kernel


def penalty_loss_pallas(output_logits, expert_logits, target,
                        m_list, per_cls_weights_base, per_cls_weights_diversity,
                        s=30.0, base_loss_factor=1.0,
                        additional_diversity_factor=-0.2,
                        base_diversity_temperature=1.0,
                        block_b=128, store_dtype=jnp.bfloat16):
    E, B, C = expert_logits.shape

    # --- batch tile: multiple of 8, shrink until VMEM estimate stays small ---
    TB = _round_up(min(int(block_b), _round_up(B, 8)), 8)
    lane = max(C, 128)

    def vmem_est(tb):
        return 4 * (4 * tb * lane      # double-buffered base + expert blocks (f32 upper bound)
                    + 2 * tb * 128     # target block
                    + 3 * tb * lane    # (TB,C) scratches (onehot, margin_adj, p)
                    + 2 * tb * 128     # (TB,1) scratches
                    + 16 * lane)       # params + tiny scratches/outputs

    while vmem_est(TB) > (40 << 20) and TB > 8:
        TB = _round_up(max(TB // 2, 8), 8)
    B_pad = _round_up(B, TB)
    nbt = B_pad // TB

    # --- pack inputs: logits live in HBM as bf16, class params packed (3, C) ---
    base = output_logits.astype(store_dtype)
    experts = expert_logits.astype(store_dtype)
    tgt = target.astype(jnp.int32)
    if B_pad != B:
        pad = B_pad - B
        base = jnp.pad(base, ((0, pad), (0, 0)))
        experts = jnp.pad(experts, ((0, 0), (0, pad), (0, 0)))
        tgt = jnp.pad(tgt, (0, pad))
    tgt = tgt.reshape(B_pad, 1)

    m_list = m_list.astype(jnp.float32)
    wb = per_cls_weights_base.astype(jnp.float32)
    wd = per_cls_weights_diversity.astype(jnp.float32)
    temp = base_diversity_temperature * wd                           # (C,)
    params = jnp.stack([m_list * float(s), wb, 1.0 / temp], axis=0)  # (3, C) f32

    kernel = _make_kernel(TB, C, B)

    grid_spec = pltpu.PrefetchScalarGridSpec(
        num_scalar_prefetch=0,
        grid=(nbt, E),                                            # experts innermost
        in_specs=[
            pl.BlockSpec((TB, C), lambda i, e: (i, 0)),           # base (resident over e)
            pl.BlockSpec((1, TB, C), lambda i, e: (e, i, 0)),     # one expert tile / step
            pl.BlockSpec((TB, 1), lambda i, e: (i, 0)),           # targets
            pl.BlockSpec((3, C), lambda i, e: (0, 0)),            # packed class params
        ],
        out_specs=[
            pl.BlockSpec((1, 1, 1), lambda i, e: (i, 0, 0)),      # per-tile CE partial
            pl.BlockSpec((1, 1, 1), lambda i, e: (i, 0, 0)),      # per-tile KL partial
        ],
        scratch_shapes=[
            pltpu.VMEM((TB, C), jnp.float32),   # onehot
            pltpu.VMEM((TB, C), jnp.float32),   # margin adjustment (hoisted)
            pltpu.VMEM((TB, C), jnp.float32),   # p = softmax(base / T)
            pltpu.VMEM((TB, 1), jnp.float32),   # per-row CE weight (masked)
            pltpu.VMEM((TB, 1), jnp.float32),   # valid-row mask
            pltpu.VMEM((1, 1), jnp.float32),    # sum(p * log p) over the tile
            pltpu.VMEM((1, 1), jnp.float32),    # CE partial accumulator
            pltpu.VMEM((1, 1), jnp.float32),    # KL partial accumulator
        ],
    )

    a_parts, d_parts = pl.pallas_call(
        kernel,
        out_shape=(jax.ShapeDtypeStruct((nbt, 1, 1), jnp.float32),
                   jax.ShapeDtypeStruct((nbt, 1, 1), jnp.float32)),
        grid_spec=grid_spec,
        compiler_params=pltpu.CompilerParams(
            dimension_semantics=("parallel", "arbitrary"),
            vmem_limit_bytes=int(min(max(2 * vmem_est(TB), 16 << 20), 48 << 20)),
        ),
    )(base, experts, tgt, params)

    # --- tiny expert-/tile-independent scalars + final combine (XLA) ---
    A = jnp.sum(a_parts)                       # sum_e sum_i w_i * nll_{e,i}
    D = jnp.sum(d_parts)                       # sum_e sum_i p.(log p - log q_e)
    W = jnp.sum(wb[target])                    # sum_i w_i (expert independent)
    temp_mean = jnp.mean(temp)
    div_scale = additional_diversity_factor * temp_mean * temp_mean
    return base_loss_factor * A / W + div_scale * D / B


def penalty_loss_ref(output_logits, expert_logits, target,
                     m_list, wb, wd, s=30.0, base_loss_factor=1.0,
                     additional_diversity_factor=-0.2, base_temp=1.0):
    """Pure-JAX reference mirroring the PyTorch forward()."""
    E, B, C = expert_logits.shape
    onehot = jax.nn.one_hot(target, C, dtype=jnp.float32)
    total = 0.0
    for e in range(E):
        x = expert_logits[e]
        batch_m = (onehot * m_list[None, :]).sum(axis=1, keepdims=True)
        final = jnp.where(onehot > 0.5, x - batch_m * s, x)
        logp = jax.nn.log_softmax(final, axis=1)
        nll = -(onehot * logp).sum(axis=1)
        w_i = wb[target]
        ce = (w_i * nll).sum() / w_i.sum()
        temp = base_temp * wd[None, :]
        tm = temp.mean()
        log_q = jax.nn.log_softmax(x / temp, axis=1)
        p = jax.nn.softmax(output_logits / temp, axis=1)
        kl = (p * (jnp.log(p) - log_q)).sum() / B
        total = total + base_loss_factor * ce + additional_diversity_factor * tm * tm * kl
    return total


if __name__ == "__main__":
    # ---- deterministic "module __init__" parameter setup ----
    cls_num_list = np.array([100., 80., 60., 40., 20., 10., 5., 2.], dtype=np.float64)
    C = len(cls_num_list)
    max_m, s_scale, reweight_factor = 0.5, 30.0, 0.05

    m_list = 1.0 / np.sqrt(np.sqrt(cls_num_list))
    m_list = m_list * (max_m / np.max(m_list))

    beta = 0.9999
    effective_num = 1.0 - np.power(beta, cls_num_list)
    per_cls_weights_base = (1.0 - beta) / effective_num
    per_cls_weights_base = per_cls_weights_base / np.sum(per_cls_weights_base) * C

    frac = cls_num_list / np.sum(cls_num_list)
    pcw_div = C * frac * reweight_factor + 1 - reweight_factor
    pcw_div = pcw_div / np.max(pcw_div)

    m_list = jnp.asarray(m_list, jnp.float32)
    per_cls_weights_base = jnp.asarray(per_cls_weights_base, jnp.float32)
    per_cls_weights_diversity = jnp.asarray(pcw_div, jnp.float32)

    # ---- deterministic inputs (B=13 exercises batch padding + masking; TB=8 -> 2 tiles) ----
    B, E = 13, 3
    key = jax.random.PRNGKey(0)
    k1, k2, k3 = jax.random.split(key, 3)
    output_logits = jax.random.normal(k1, (B, C), dtype=jnp.float32)
    expert_logits = jax.random.normal(k2, (E, B, C), dtype=jnp.float32)
    target = jax.random.randint(k3, (B,), 0, C, dtype=jnp.int32)

    # pre-round to bf16 so the kernel (bf16 HBM storage) and the f32 reference
    # consume bit-identical data; all in-kernel math stays f32.
    output_logits = output_logits.astype(jnp.bfloat16).astype(jnp.float32)
    expert_logits = expert_logits.astype(jnp.bfloat16).astype(jnp.float32)

    loss = penalty_loss_pallas(output_logits, expert_logits, target,
                               m_list, per_cls_weights_base, per_cls_weights_diversity,
                               s=s_scale, block_b=8)
    loss = jax.block_until_ready(loss)

    ref = penalty_loss_ref(output_logits, expert_logits, target,
                           m_list, per_cls_weights_base, per_cls_weights_diversity,
                           s=s_scale)
    ref = jax.block_until_ready(ref)

    if not np.allclose(np.asarray(loss), np.asarray(ref), rtol=1e-3, atol=1e-4):
        raise AssertionError(f"mismatch: pallas={float(loss)} ref={float(ref)}")

    print("KERNEL_OK")
</pallas_src>

<mosaic_0001>
module attributes {stable_mosaic.version = 11 : i64} {
  func.func @kernel(%arg0: i32, %arg1: i32, %arg2: memref<8x8xbf16, #tpu.memory_space<vmem>>, %arg3: memref<1x8x8xbf16, #tpu.memory_space<vmem>>, %arg4: memref<8x1xi32, #tpu.memory_space<vmem>>, %arg5: memref<3x8xf32, #tpu.memory_space<vmem>>, %arg6: memref<1x1x1xf32, #tpu.memory_space<vmem>>, %arg7: memref<1x1x1xf32, #tpu.memory_space<vmem>>, %arg8: memref<8x8xf32, #tpu.memory_space<vmem>>, %arg9: memref<8x8xf32, #tpu.memory_space<vmem>>, %arg10: memref<8x8xf32, #tpu.memory_space<vmem>>, %arg11: memref<8x1xf32, #tpu.memory_space<vmem>>, %arg12: memref<8x1xf32, #tpu.memory_space<vmem>>, %arg13: memref<1x1xf32, #tpu.memory_space<vmem>>, %arg14: memref<1x1xf32, #tpu.memory_space<vmem>>, %arg15: memref<1x1xf32, #tpu.memory_space<vmem>>) attributes {dimension_semantics = [#tpu.dimension_semantics<parallel>, #tpu.dimension_semantics<arbitrary>], iteration_bounds = array<i64: 2, 3>, scalar_prefetch = 0 : i64, scratch_operands = 8 : i64, tpu.core_type = #tpu.core_type<tc>, window_params = [{transform_indices = @transform_0, window_bounds = array<i64: 8, 8>}, {transform_indices = @transform_1, window_bounds = array<i64: 1, 8, 8>}, {transform_indices = @transform_2, window_bounds = array<i64: 8, 1>}, {pipeline_mode = #tpu.pipeline_mode<synchronous>, transform_indices = @transform_3, window_bounds = array<i64: 3, 8>}, {transform_indices = @transform_4, window_bounds = array<i64: 1, 1, 1>}, {transform_indices = @transform_5, window_bounds = array<i64: 1, 1, 1>}]} {
    %c2 = arith.constant 2 : index
    %c0 = arith.constant 0 : index
    %0 = vector.load %arg5[%c2, %c0] : memref<3x8xf32, #tpu.memory_space<vmem>>, vector<1x8xf32>
    %c0_i32 = arith.constant 0 : i32
    %1 = arith.cmpi eq, %arg1, %c0_i32 : i32
    %2 = arith.extui %1 : i1 to i32
    %c0_i32_0 = arith.constant 0 : i32
    %3 = arith.cmpi ne, %2, %c0_i32_0 : i32
    scf.if %3 {
      %c0_32 = arith.constant 0 : index
      %c0_33 = arith.constant 0 : index
      %62 = vector.load %arg4[%c0_32, %c0_33] : memref<8x1xi32, #tpu.memory_space<vmem>>, vector<8x1xi32>
      %63 = tpu.iota {dimensions = array<i32: 1>} : vector<8x8xi32>
      %64 = vector.broadcast %62 : vector<8x1xi32> to vector<8x8xi32>
      %65 = arith.cmpi eq, %63, %64 : vector<8x8xi32>
      %66 = arith.extui %65 : vector<8x8xi1> to vector<8x8xi32>
      %67 = arith.sitofp %66 : vector<8x8xi32> to vector<8x8xf32>
      %c0_34 = arith.constant 0 : index
      %c0_35 = arith.constant 0 : index
      %68 = vector.load %arg8[%c0_34, %c0_35] : memref<8x8xf32, #tpu.memory_space<vmem>>, vector<8x8xf32>
      tpu.vector_store %arg8[%c0_34, %c0_35], %67 {strides = array<i32>} : memref<8x8xf32, #tpu.memory_space<vmem>>, vector<8x8xf32>,
      %c0_36 = arith.constant 0 : index
      %c0_37 = arith.constant 0 : index
      %69 = vector.load %arg5[%c0_36, %c0_37] : memref<3x8xf32, #tpu.memory_space<vmem>>, vector<1x8xf32>
      %70 = vector.broadcast %69 : vector<1x8xf32> to vector<8x8xf32>
      %71 = arith.mulf %67, %70 : vector<8x8xf32>
      %c0_38 = arith.constant 0 : index
      %c0_39 = arith.constant 0 : index
      %72 = vector.load %arg9[%c0_38, %c0_39] : memref<8x8xf32, #tpu.memory_space<vmem>>, vector<8x8xf32>
      tpu.vector_store %arg9[%c0_38, %c0_39], %71 {strides = array<i32>} : memref<8x8xf32, #tpu.memory_space<vmem>>, vector<8x8xf32>,
      %73 = tpu.iota {dimensions = array<i32: 0>} : vector<8x1xi32>
      %c8_i32 = arith.constant 8 : i32
      %74 = arith.muli %arg0, %c8_i32 : i32
      %75 = vector.broadcast %74 : i32 to vector<8x1xi32>
      %76 = arith.addi %75, %73 : vector<8x1xi32>
      %c13_i32 = arith.constant 13 : i32
      %77 = vector.broadcast %c13_i32 : i32 to vector<8x1xi32>
      %78 = arith.cmpi slt, %76, %77 : vector<8x1xi32>
      %79 = arith.extui %78 : vector<8x1xi1> to vector<8x1xi32>
      %80 = arith.sitofp %79 : vector<8x1xi32> to vector<8x1xf32>
      %c0_40 = arith.constant 0 : index
      %c0_41 = arith.constant 0 : index
      %81 = vector.load %arg12[%c0_40, %c0_41] : memref<8x1xf32, #tpu.memory_space<vmem>>, vector<8x1xf32>
      tpu.vector_store %arg12[%c0_40, %c0_41], %80 {strides = array<i32>} : memref<8x1xf32, #tpu.memory_space<vmem>>, vector<8x1xf32>,
      %c1 = arith.constant 1 : index
      %c0_42 = arith.constant 0 : index
      %82 = vector.load %arg5[%c1, %c0_42] : memref<3x8xf32, #tpu.memory_space<vmem>>, vector<1x8xf32>
      %83 = vector.broadcast %82 : vector<1x8xf32> to vector<8x8xf32>
      %84 = arith.mulf %67, %83 : vector<8x8xf32>
      %cst_43 = arith.constant dense<0.000000e+00> : vector<8xf32>
      %85 = vector.multi_reduction <add>, %84, %cst_43 [1] : vector<8x8xf32> to vector<8xf32>
      %86 = vector.shape_cast %85 : vector<8xf32> to vector<8x1xf32>
      %87 = arith.mulf %80, %86 : vector<8x1xf32>
      %c0_44 = arith.constant 0 : index
      %c0_45 = arith.constant 0 : index
      %88 = vector.load %arg11[%c0_44, %c0_45] : memref<8x1xf32, #tpu.memory_space<vmem>>, vector<8x1xf32>
      tpu.vector_store %arg11[%c0_44, %c0_45], %87 {strides = array<i32>} : memref<8x1xf32, #tpu.memory_space<vmem>>, vector<8x1xf32>,
      %c0_46 = arith.constant 0 : index
      %c0_47 = arith.constant 0 : index
      %89 = vector.load %arg2[%c0_46, %c0_47] : memref<8x8xbf16, #tpu.memory_space<vmem>>, vector<8x8xbf16>
      %90 = arith.extf %89 : vector<8x8xbf16> to vector<8x8xf32>
      %91 = vector.broadcast %0 : vector<1x8xf32> to vector<8x8xf32>
      %92 = arith.mulf %90, %91 : vector<8x8xf32>
      %cst_48 = arith.constant dense<0xFF800000> : vector<8xf32>
      %93 = vector.multi_reduction <maximumf>, %92, %cst_48 [1] : vector<8x8xf32> to vector<8xf32>
      %94 = vector.shape_cast %93 : vector<8xf32> to vector<8x1xf32>
      %95 = vector.broadcast %94 : vector<8x1xf32> to vector<8x8xf32>
      %96 = arith.subf %92, %95 : vector<8x8xf32>
      %97 = math.exp %96 : vector<8x8xf32>
      %cst_49 = arith.constant dense<0.000000e+00> : vector<8xf32>
      %98 = vector.multi_reduction <add>, %97, %cst_49 [1] : vector<8x8xf32> to vector<8xf32>
      %99 = vector.shape_cast %98 : vector<8xf32> to vector<8x1xf32>
      %100 = math.log %99 : vector<8x1xf32>
      %101 = tpu.reciprocal %99 : vector<8x1xf32> -> vector<8x1xf32>
      %102 = vector.broadcast %101 : vector<8x1xf32> to vector<8x8xf32>
      %103 = arith.mulf %97, %102 : vector<8x8xf32>
      %c0_50 = arith.constant 0 : index
      %c0_51 = arith.constant 0 : index
      %104 = vector.load %arg10[%c0_50, %c0_51] : memref<8x8xf32, #tpu.memory_space<vmem>>, vector<8x8xf32>
      tpu.vector_store %arg10[%c0_50, %c0_51], %103 {strides = array<i32>} : memref<8x8xf32, #tpu.memory_space<vmem>>, vector<8x8xf32>,
      %105 = arith.mulf %103, %96 : vector<8x8xf32>
      %cst_52 = arith.constant dense<0.000000e+00> : vector<8xf32>
      %106 = vector.multi_reduction <add>, %105, %cst_52 [1] : vector<8x8xf32> to vector<8xf32>
      %107 = vector.shape_cast %106 : vector<8xf32> to vector<8x1xf32>
      %108 = arith.subf %107, %100 : vector<8x1xf32>
      %109 = arith.mulf %80, %108 : vector<8x1xf32>
      %110 = vector.shape_cast %109 : vector<8x1xf32> to vector<1x8x1xf32>
      %cst_53 = arith.constant dense<0.000000e+00> : vector<1xf32>
      %111 = vector.multi_reduction <add>, %110, %cst_53 [1, 2] : vector<1x8x1xf32> to vector<1xf32>
      %112 = vector.shape_cast %111 : vector<1xf32> to vector<1x1x1xf32>
      %113 = vector.extract %112[0, 0, 0] : f32 from vector<1x1x1xf32>
      %114 = vector.broadcast %113 : f32 to vector<1x1xf32>
      %c0_54 = arith.constant 0 : index
      %c0_55 = arith.constant 0 : index
      %115 = vector.load %arg13[%c0_54, %c0_55] : memref<1x1xf32, #tpu.memory_space<vmem>>, vector<1x1xf32>
      tpu.vector_store %arg13[%c0_54, %c0_55], %114 {strides = array<i32>} : memref<1x1xf32, #tpu.memory_space<vmem>>, vector<1x1xf32>,
      %cst_56 = arith.constant 0.000000e+00 : f32
      %116 = vector.broadcast %cst_56 : f32 to vector<1x1xf32>
      %c0_57 = arith.constant 0 : index
      %c0_58 = arith.constant 0 : index
      %117 = vector.load %arg14[%c0_57, %c0_58] : memref<1x1xf32, #tpu.memory_space<vmem>>, vector<1x1xf32>
      tpu.vector_store %arg14[%c0_57, %c0_58], %116 {strides = array<i32>} : memref<1x1xf32, #tpu.memory_space<vmem>>, vector<1x1xf32>,
      %cst_59 = arith.constant 0.000000e+00 : f32
      %118 = vector.broadcast %cst_59 : f32 to vector<1x1xf32>
      %c0_60 = arith.constant 0 : index
      %c0_61 = arith.constant 0 : index
      %119 = vector.load %arg15[%c0_60, %c0_61] : memref<1x1xf32, #tpu.memory_space<vmem>>, vector<1x1xf32>
      tpu.vector_store %arg15[%c0_60, %c0_61], %118 {strides = array<i32>} : memref<1x1xf32, #tpu.memory_space<vmem>>, vector<1x1xf32>,
    } else {
    }
    %c0_1 = arith.constant 0 : index
    %c0_2 = arith.constant 0 : index
    %c0_3 = arith.constant 0 : index
    %4 = vector.load %arg3[%c0_1, %c0_2, %c0_3] : memref<1x8x8xbf16, #tpu.memory_space<vmem>>, vector<1x8x8xbf16>
    %5 = vector.shape_cast %4 : vector<1x8x8xbf16> to vector<8x8xbf16>
    %6 = arith.extf %5 : vector<8x8xbf16> to vector<8x8xf32>
    %c0_4 = arith.constant 0 : index
    %c0_5 = arith.constant 0 : index
    %7 = vector.load %arg8[%c0_4, %c0_5] : memref<8x8xf32, #tpu.memory_space<vmem>>, vector<8x8xf32>
    %c0_6 = arith.constant 0 : index
    %c0_7 = arith.constant 0 : index
    %8 = vector.load %arg12[%c0_6, %c0_7] : memref<8x1xf32, #tpu.memory_space<vmem>>, vector<8x1xf32>
    %c0_8 = arith.constant 0 : index
    %c0_9 = arith.constant 0 : index
    %9 = vector.load %arg9[%c0_8, %c0_9] : memref<8x8xf32, #tpu.memory_space<vmem>>, vector<8x8xf32>
    %10 = arith.subf %6, %9 : vector<8x8xf32>
    %cst = arith.constant dense<0xFF800000> : vector<8xf32>
    %11 = vector.multi_reduction <maximumf>, %10, %cst [1] : vector<8x8xf32> to vector<8xf32>
    %12 = vector.shape_cast %11 : vector<8xf32> to vector<8x1xf32>
    %13 = vector.broadcast %12 : vector<8x1xf32> to vector<8x8xf32>
    %14 = arith.subf %10, %13 : vector<8x8xf32>
    %15 = math.exp %14 : vector<8x8xf32>
    %cst_10 = arith.constant dense<0.000000e+00> : vector<8xf32>
    %16 = vector.multi_reduction <add>, %15, %cst_10 [1] : vector<8x8xf32> to vector<8xf32>
    %17 = vector.shape_cast %16 : vector<8xf32> to vector<8x1xf32>
    %18 = math.log %17 : vector<8x1xf32>
    %19 = arith.mulf %7, %14 : vector<8x8xf32>
    %cst_11 = arith.constant dense<0.000000e+00> : vector<8xf32>
    %20 = vector.multi_reduction <add>, %19, %cst_11 [1] : vector<8x8xf32> to vector<8xf32>
    %21 = vector.shape_cast %20 : vector<8xf32> to vector<8x1xf32>
    %22 = arith.subf %18, %21 : vector<8x1xf32>
    %c0_12 = arith.constant 0 : index
    %c0_13 = arith.constant 0 : index
    %23 = vector.load %arg14[%c0_12, %c0_13] : memref<1x1xf32, #tpu.memory_space<vmem>>, vector<1x1xf32>
    %c0_14 = arith.constant 0 : index
    %c0_15 = arith.constant 0 : index
    %24 = vector.load %arg11[%c0_14, %c0_15] : memref<8x1xf32, #tpu.memory_space<vmem>>, vector<8x1xf32>
    %25 = arith.mulf %24, %22 : vector<8x1xf32>
    %26 = vector.shape_cast %25 : vector<8x1xf32> to vector<1x8x1xf32>
    %cst_16 = arith.constant dense<0.000000e+00> : vector<1xf32>
    %27 = vector.multi_reduction <add>, %26, %cst_16 [1, 2] : vector<1x8x1xf32> to vector<1xf32>
    %28 = vector.shape_cast %27 : vector<1xf32> to vector<1x1x1xf32>
    %29 = vector.extract %28[0, 0, 0] : f32 from vector<1x1x1xf32>
    %30 = vector.broadcast %29 : f32 to vector<1x1xf32>
    %31 = arith.addf %23, %30 : vector<1x1xf32>
    %c0_17 = arith.constant 0 : index
    %c0_18 = arith.constant 0 : index
    %32 = vector.load %arg14[%c0_17, %c0_18] : memref<1x1xf32, #tpu.memory_space<vmem>>, vector<1x1xf32>
    tpu.vector_store %arg14[%c0_17, %c0_18], %31 {strides = array<i32>} : memref<1x1xf32, #tpu.memory_space<vmem>>, vector<1x1xf32>,
    %33 = vector.broadcast %0 : vector<1x8xf32> to vector<8x8xf32>
    %34 = arith.mulf %6, %33 : vector<8x8xf32>
    %cst_19 = arith.constant dense<0xFF800000> : vector<8xf32>
    %35 = vector.multi_reduction <maximumf>, %34, %cst_19 [1] : vector<8x8xf32> to vector<8xf32>
    %36 = vector.shape_cast %35 : vector<8xf32> to vector<8x1xf32>
    %37 = vector.broadcast %36 : vector<8x1xf32> to vector<8x8xf32>
    %38 = arith.subf %34, %37 : vector<8x8xf32>
    %39 = math.exp %38 : vector<8x8xf32>
    %cst_20 = arith.constant dense<0.000000e+00> : vector<8xf32>
    %40 = vector.multi_reduction <add>, %39, %cst_20 [1] : vector<8x8xf32> to vector<8xf32>
    %41 = vector.shape_cast %40 : vector<8xf32> to vector<8x1xf32>
    %42 = math.log %41 : vector<8x1xf32>
    %c0_21 = arith.constant 0 : index
    %c0_22 = arith.constant 0 : index
    %43 = vector.load %arg10[%c0_21, %c0_22] : memref<8x8xf32, #tpu.memory_space<vmem>>, vector<8x8xf32>
    %44 = arith.mulf %43, %38 : vector<8x8xf32>
    %cst_23 = arith.constant dense<0.000000e+00> : vector<8xf32>
    %45 = vector.multi_reduction <add>, %44, %cst_23 [1] : vector<8x8xf32> to vector<8xf32>
    %46 = vector.shape_cast %45 : vector<8xf32> to vector<8x1xf32>
    %47 = arith.subf %46, %42 : vector<8x1xf32>
    %48 = arith.mulf %8, %47 : vector<8x1xf32>
    %49 = vector.shape_cast %48 : vector<8x1xf32> to vector<1x8x1xf32>
    %cst_24 = arith.constant dense<0.000000e+00> : vector<1xf32>
    %50 = vector.multi_reduction <add>, %49, %cst_24 [1, 2] : vector<1x8x1xf32> to vector<1xf32>
    %51 = vector.shape_cast %50 : vector<1xf32> to vector<1x1x1xf32>
    %52 = vector.extract %51[0, 0, 0] : f32 from vector<1x1x1xf32>
    %c0_25 = arith.constant 0 : index
    %c0_26 = arith.constant 0 : index
    %53 = vector.load %arg15[%c0_25, %c0_26] : memref<1x1xf32, #tpu.memory_space<vmem>>, vector<1x1xf32>
    %c0_27 = arith.constant 0 : index
    %c0_28 = arith.constant 0 : index
    %54 = vector.load %arg13[%c0_27, %c0_28] : memref<1x1xf32, #tpu.memory_space<vmem>>, vector<1x1xf32>
    %55 = vector.broadcast %52 : f32 to vector<1x1xf32>
    %56 = arith.subf %54, %55 : vector<1x1xf32>
    %57 = arith.addf %53, %56 : vector<1x1xf32>
    %c0_29 = arith.constant 0 : index
    %c0_30 = arith.constant 0 : index
    %58 = vector.load %arg15[%c0_29, %c0_30] : memref<1x1xf32, #tpu.memory_space<vmem>>, vector<1x1xf32>
    tpu.vector_store %arg15[%c0_29, %c0_30], %57 {strides = array<i32>} : memref<1x1xf32, #tpu.memory_space<vmem>>, vector<1x1xf32>,
    %c2_i32 = arith.constant 2 : i32
    %59 = arith.cmpi eq, %arg1, %c2_i32 : i32
    %60 = arith.extui %59 : i1 to i32
    %c0_i32_31 = arith.constant 0 : i32
    %61 = arith.cmpi ne, %60, %c0_i32_31 : i32
    scf.if %61 {
      %c0_32 = arith.constant 0 : index
      %c0_33 = arith.constant 0 : index
      %62 = vector.load %arg14[%c0_32, %c0_33] : memref<1x1xf32, #tpu.memory_space<vmem>>, vector<1x1xf32>
      %63 = vector.shape_cast %62 : vector<1x1xf32> to vector<1x1x1xf32>
      %c0_34 = arith.constant 0 : index
      %c0_35 = arith.constant 0 : index
      %c0_36 = arith.constant 0 : index
      %64 = vector.load %arg6[%c0_34, %c0_35, %c0_36] : memref<1x1x1xf32, #tpu.memory_space<vmem>>, vector<1x1x1xf32>
      tpu.vector_store %arg6[%c0_34, %c0_35, %c0_36], %63 {strides = array<i32>} : memref<1x1x1xf32, #tpu.memory_space<vmem>>, vector<1x1x1xf32>,
      %c0_37 = arith.constant 0 : index
      %c0_38 = arith.constant 0 : index
      %65 = vector.load %arg15[%c0_37, %c0_38] : memref<1x1xf32, #tpu.memory_space<vmem>>, vector<1x1xf32>
      %66 = vector.shape_cast %65 : vector<1x1xf32> to vector<1x1x1xf32>
      %c0_39 = arith.constant 0 : index
      %c0_40 = arith.constant 0 : index
      %c0_41 = arith.constant 0 : index
      %67 = vector.load %arg7[%c0_39, %c0_40, %c0_41] : memref<1x1x1xf32, #tpu.memory_space<vmem>>, vector<1x1x1xf32>
      tpu.vector_store %arg7[%c0_39, %c0_40, %c0_41], %66 {strides = array<i32>} : memref<1x1x1xf32, #tpu.memory_space<vmem>>, vector<1x1x1xf32>,
    } else {
    }
    return
  }
  func.func @transform_0(%arg0: i32, %arg1: i32) -> (i32, i32) {
    %c0_i32 = arith.constant 0 : i32
    %c0_i32_0 = arith.constant 0 : i32
    return %arg0, %c0_i32 : i32, i32
  }
  func.func @transform_1(%arg0: i32, %arg1: i32) -> (i32, i32, i32) {
    %c0_i32 = arith.constant 0 : i32
    %c0_i32_0 = arith.constant 0 : i32
    return %arg1, %arg0, %c0_i32 : i32, i32, i32
  }
  func.func @transform_2(%arg0: i32, %arg1: i32) -> (i32, i32) {
    %c0_i32 = arith.constant 0 : i32
    %c0_i32_0 = arith.constant 0 : i32
    return %arg0, %c0_i32 : i32, i32
  }
  func.func @transform_3(%arg0: i32, %arg1: i32) -> (i32, i32) {
    %c0_i32 = arith.constant 0 : i32
    %c0_i32_0 = arith.constant 0 : i32
    %c0_i32_1 = arith.constant 0 : i32
    return %c0_i32, %c0_i32_0 : i32, i32
  }
  func.func @transform_4(%arg0: i32, %arg1: i32) -> (i32, i32, i32) {
    %c0_i32 = arith.constant 0 : i32
    %c0_i32_0 = arith.constant 0 : i32
    %c0_i32_1 = arith.constant 0 : i32
    return %arg0, %c0_i32, %c0_i32_0 : i32, i32, i32
  }
  func.func @transform_5(%arg0: i32, %arg1: i32) -> (i32, i32, i32) {
    %c0_i32 = arith.constant 0 : i32
    %c0_i32_0 = arith.constant 0 : i32
    %c0_i32_1 = arith.constant 0 : i32
    return %arg0, %c0_i32, %c0_i32_0 : i32, i32, i32
  }
}

</mosaic_0001>

<llo_original>
// kernel: tpu_custom_call.1
$region0: #{tpu_custom_call.1}
  #allocation0 [shape = 'u32[]', space=smem, size = 0x4, offset = 0x4, fixed_abs, tag = 'smem constant byte address 0x4 - core index']
  #allocation1 [shape = 'u32[144,128]{1,0:T(1,128)}', space=vmem, size = 0x12000, scoped, tag = 'internal scratch']
  #allocation2 [shape = 'f32[8,8]{1,0:T(8,128)}', space=vmem, size = 0x1000, scoped, tag = 'scratch operand']
  #allocation3 [shape = 'f32[8,8]{1,0:T(8,128)}', space=vmem, size = 0x1000, scoped, tag = 'scratch operand']
  #allocation4 [shape = 'f32[8,8]{1,0:T(8,128)}', space=vmem, size = 0x1000, scoped, tag = 'scratch operand']
  #allocation5 [shape = 'f32[8,1]{1,0:T(8,128)}', space=vmem, size = 0x1000, scoped, tag = 'scratch operand']
  #allocation6 [shape = 'f32[8,1]{1,0:T(8,128)}', space=vmem, size = 0x1000, scoped, tag = 'scratch operand']
  #allocation7 [shape = 'f32[1,1]{1,0:T(1,128)}', space=vmem, size = 0x200, scoped, tag = 'scratch operand']
  #allocation8 [shape = 'f32[1,1]{1,0:T(1,128)}', space=vmem, size = 0x200, scoped, tag = 'scratch operand']
  #allocation9 [shape = 'f32[1,1]{1,0:T(1,128)}', space=vmem, size = 0x200, scoped, tag = 'scratch operand']
  %s0 = inlined_call_operand.vmem [shape: bf16[16,8], index: 0, kind: input, shape index: {}]
  %s1 = inlined_call_operand.vmem [shape: bf16[3,16,8], index: 1, kind: input, shape index: {}]
  %s2 = inlined_call_operand.vmem [shape: s32[16,1], index: 2, kind: input, shape index: {}]
  %s3 = inlined_call_operand.vmem [shape: f32[3,8], index: 3, kind: input, shape index: {}]
  %s4 = inlined_call_operand.vmem [shape: f32[2,1,1], index: 4, kind: output, shape index: {0}]
  %s5 = inlined_call_operand.vmem [shape: f32[2,1,1], index: 5, kind: output, shape index: {1}]
  %6 = xla_tuple %s4, %s5
  %s7 = sld [smem:[#allocation0]]
  $region65: #{tpu_custom_call.1} parent=0
    _
  %s9 = ssub.s32 1, %s7
  %s10 = scalar_select 0, %s9, %s7
  loop: start=0, step=1, limit=8
  $region2: #{tpu_custom_call.1} parent=0 // loop_pre_header
    _
  $region3: #{tpu_custom_call.1} parent=0 // loop_header
    %s12 = sphi 0, %s16
    %p13 = scmp.ge.s32.totalorder %s12, 8
    %s19 = sphi 0, %s31
    %s20 = sphi 0, %s27
    %s21 = sphi 0, %s19
    %s22 = sphi 0, %s20
    %s23 = sphi 0, %s21
    %s24 = sphi 0, %s22
    %s34 = sphi 0, %s36
    %s37 = sphi 0, %s34
    %s38 = sphi 0, %s37
    %s54 = sphi 0, %s38
    %s62 = sphi 0, %s64
    %s65 = sphi 0, %s62
    %s66 = sphi 0, %s65
    %s82 = sphi 0, %s66
    %s88 = sphi 0, %s90
    %s91 = sphi 0, %s88
    %s92 = sphi 0, %s91
    %s108 = sphi 0, %s92
    %s112 = sphi 0, %s112
    %s114 = sphi 0, %s112
    %s115 = sphi 0, %s114
    %s129 = sphi 0, %s115
    %s135 = sphi 0, %s137
    %s138 = sphi 0, %s135
    %s139 = sphi 0, %s138
    %s155 = sphi 0, %s139
    %s161 = sphi 0, %s163
    %s164 = sphi 0, %s161
    %s165 = sphi 0, %s164
    %s181 = sphi 0, %s165
  $region4: #{tpu_custom_call.1} parent=0 // loop_header_branch
    %15 = sbr.rel (%p13) target = $region8
  $region5: #{tpu_custom_call.1} parent=0 // loop_body
    %s17 = ssub.s32 %s12, 1
    %s18 = ssub.s32 %s12, 2
    %s25 = sadd.s32 1, %s20
    %p26 = scmp.ge.s32.totalorder %s25, 3
    %s27 = scalar_select %p26, 0, %s25
    %s28 = sadd.s32 1, %s19
    %s29 = scalar_select %p26, %s28, %s19
    %p30 = scmp.ge.s32.totalorder %s29, 2
    %s31 = scalar_select %p30, 0, %s29
    %s32 = ssub.s32 %s19, %s31
    %p33 = scmp.eq.s32.totalorder %s32, 0
    %s35 = sadd.s32 %s34, 1
    %s36 = scalar_select %p33, %s34, %s35
    %p39 = pneg %p33
    %p40 = scmp.eq.s32.totalorder %s12, 5
    %p41 = por %p39, %p40
    %p42 = scmp.ne.s32.totalorder %s34, %s37
    %p43 = scmp.eq.s32.totalorder %s12, 0
    %p44 = por %p42, %p43
    %p45 = scmp.ne.s32.totalorder %s34, %s37
    %p46 = scmp.eq.s32.totalorder %s17, 5
    %p47 = por %p45, %p46
    %p48 = scmp.ne.s32.totalorder %s37, %s38
    %p49 = scmp.eq.s32.totalorder %s17, 0
    %p50 = por %p48, %p49
    %p51 = scmp.ne.s32.totalorder %s37, %s38
    %p52 = scmp.eq.s32.totalorder %s18, 5
    %p53 = por %p51, %p52
    %p55 = scmp.ne.s32.totalorder %s38, %s54
    %p56 = scmp.eq.s32.totalorder %s18, 0
    %p57 = por %p55, %p56
    %s58 = ssub.s32 %s20, %s27
    %s59 = ssub.s32 %s19, %s31
    %s60 = sor.u32 %s58, %s59
    %p61 = scmp.eq.s32.totalorder %s60, 0
    %s63 = sadd.s32 %s62, 1
    %s64 = scalar_select %p61, %s62, %s63
    %p67 = pneg %p61
    %p68 = scmp.eq.s32.totalorder %s12, 5
    %p69 = por %p67, %p68
    %p70 = scmp.ne.s32.totalorder %s62, %s65
    %p71 = scmp.eq.s32.totalorder %s12, 0
    %p72 = por %p70, %p71
    %p73 = scmp.ne.s32.totalorder %s62, %s65
    %p74 = scmp.eq.s32.totalorder %s17, 5
    %p75 = por %p73, %p74
    %p76 = scmp.ne.s32.totalorder %s65, %s66
    %p77 = scmp.eq.s32.totalorder %s17, 0
    %p78 = por %p76, %p77
    %p79 = scmp.ne.s32.totalorder %s65, %s66
    %p80 = scmp.eq.s32.totalorder %s18, 5
    %p81 = por %p79, %p80
    %p83 = scmp.ne.s32.totalorder %s66, %s82
    %p84 = scmp.eq.s32.totalorder %s18, 0
    %p85 = por %p83, %p84
    %s86 = ssub.s32 %s19, %s31
    %p87 = scmp.eq.s32.totalorder %s86, 0
    %s89 = sadd.s32 %s88, 1
    %s90 = scalar_select %p87, %s88, %s89
    %p93 = pneg %p87
    %p94 = scmp.eq.s32.totalorder %s12, 5
    %p95 = por %p93, %p94
    %p96 = scmp.ne.s32.totalorder %s88, %s91
    %p97 = scmp.eq.s32.totalorder %s12, 0
    %p98 = por %p96, %p97
    %p99 = scmp.ne.s32.totalorder %s88, %s91
    %p100 = scmp.eq.s32.totalorder %s17, 5
    %p101 = por %p99, %p100
    %p102 = scmp.ne.s32.totalorder %s91, %s92
    %p103 = scmp.eq.s32.totalorder %s17, 0
    %p104 = por %p102, %p103
    %p105 = scmp.ne.s32.totalorder %s91, %s92
    %p106 = scmp.eq.s32.totalorder %s18, 5
    %p107 = por %p105, %p106
    %p109 = scmp.ne.s32.totalorder %s92, %s108
    %p110 = scmp.eq.s32.totalorder %s18, 0
    %p111 = por %p109, %p110
    %s113 = sadd.s32 %s112, 1
    %p116 = scmp.eq.s32.totalorder %s12, 5
    %p117 = scmp.ne.s32.totalorder %s112, %s114
    %p118 = scmp.eq.s32.totalorder %s12, 0
    %p119 = por %p117, %p118
    %p120 = scmp.ne.s32.totalorder %s112, %s114
    %p121 = scmp.eq.s32.totalorder %s17, 5
    %p122 = por %p120, %p121
    %p123 = scmp.ne.s32.totalorder %s114, %s115
    %p124 = scmp.eq.s32.totalorder %s17, 0
    %p125 = por %p123, %p124
    %p126 = scmp.ne.s32.totalorder %s114, %s115
    %p127 = scmp.eq.s32.totalorder %s18, 5
    %p128 = por %p126, %p127
    %p130 = scmp.ne.s32.totalorder %s115, %s129
    %p131 = scmp.eq.s32.totalorder %s18, 0
    %p132 = por %p130, %p131
    %s133 = ssub.s32 %s19, %s31
    %p134 = scmp.eq.s32.totalorder %s133, 0
    %s136 = sadd.s32 %s135, 1
    %s137 = scalar_select %p134, %s135, %s136
    %p140 = pneg %p134
    %p141 = scmp.eq.s32.totalorder %s12, 5
    %p142 = por %p140, %p141
    %p143 = scmp.ne.s32.totalorder %s135, %s138
    %p144 = scmp.eq.s32.totalorder %s12, 0
    %p145 = por %p143, %p144
    %p146 = scmp.ne.s32.totalorder %s135, %s138
    %p147 = scmp.eq.s32.totalorder %s17, 5
    %p148 = por %p146, %p147
    %p149 = scmp.ne.s32.totalorder %s138, %s139
    %p150 = scmp.eq.s32.totalorder %s17, 0
    %p151 = por %p149, %p150
    %p152 = scmp.ne.s32.totalorder %s138, %s139
    %p153 = scmp.eq.s32.totalorder %s18, 5
    %p154 = por %p152, %p153
    %p156 = scmp.ne.s32.totalorder %s139, %s155
    %p157 = scmp.eq.s32.totalorder %s18, 0
    %p158 = por %p156, %p157
    %s159 = ssub.s32 %s19, %s31
    %p160 = scmp.eq.s32.totalorder %s159, 0
    %s162 = sadd.s32 %s161, 1
    %s163 = scalar_select %p160, %s161, %s162
    %p166 = pneg %p160
    %p167 = scmp.eq.s32.totalorder %s12, 5
    %p168 = por %p166, %p167
    %p169 = scmp.ne.s32.totalorder %s161, %s164
    %p170 = scmp.eq.s32.totalorder %s12, 0
    %p171 = por %p169, %p170
    %p172 = scmp.ne.s32.totalorder %s161, %s164
    %p173 = scmp.eq.s32.totalorder %s17, 5
    %p174 = por %p172, %p173
    %p175 = scmp.ne.s32.totalorder %s164, %s165
    %p176 = scmp.eq.s32.totalorder %s17, 0
    %p177 = por %p175, %p176
    %p178 = scmp.ne.s32.totalorder %s164, %s165
    %p179 = scmp.eq.s32.totalorder %s18, 5
    %p180 = por %p178, %p179
    %p182 = scmp.ne.s32.totalorder %s165, %s181
    %p183 = scmp.eq.s32.totalorder %s18, 0
    %p184 = por %p182, %p183
    %p185 = scmp.le.s32.totalorder 1, %s12
    %p186 = scmp.lt.s32.totalorder %s12, 7
    %p187 = pnand %p185, %p186
    %p188 = pneg %p187
    // Predicated region
    $region9: #{tpu_custom_call.1} parent=5 // pred_check
      _
    $region10: #{tpu_custom_call.1} parent=5 // pred_check_branch
      %190 = sbr.rel (%p187) target = $region12
    $region11: #{tpu_custom_call.1} parent=5 // pred_region
      %s191 = ssub.s32 %s12, 1
      // Predicated region
      $region13: #{tpu_custom_call.1} parent=11 // pred_check
        %p192 = pneg %p125
      $region14: #{tpu_custom_call.1} parent=11 // pred_check_branch
        %194 = sbr.rel (%p192) target = $region16
      $region15: #{tpu_custom_call.1} parent=11 // pred_region
        _
      $region16: #{tpu_custom_call.1} parent=11 // pred_fallthru
        _
    $region12: #{tpu_custom_call.1} parent=5 // pred_fallthru
      _
    %p195 = scmp.lt.s32.totalorder %s12, 6
    // Predicated region
    $region17: #{tpu_custom_call.1} parent=5 // pred_check
      %p196 = pneg %p195
    $region18: #{tpu_custom_call.1} parent=5 // pred_check_branch
      %198 = sbr.rel (%p196) target = $region20
    $region19: #{tpu_custom_call.1} parent=5 // pred_region
      // Predicated region
      $region21: #{tpu_custom_call.1} parent=19 // pred_check
        %p199 = pneg %p44
      $region22: #{tpu_custom_call.1} parent=19 // pred_check_branch
        %201 = sbr.rel (%p199) target = $region24
      $region23: #{tpu_custom_call.1} parent=19 // pred_region
        %p202 = scmp.lt.s32.totalorder %s19, 1
        %s203 = scalar_select %p202, %s19, 1
        %s204 = smul.addr %s203, 4
        %s205 = scalar_lea.vmem %s0, %s204
      $region24: #{tpu_custom_call.1} parent=19 // pred_fallthru
        _
      // Predicated region
      $region25: #{tpu_custom_call.1} parent=19 // pred_check
        %p206 = pneg %p72
      $region26: #{tpu_custom_call.1} parent=19 // pred_check_branch
        %208 = sbr.rel (%p206) target = $region28
      $region27: #{tpu_custom_call.1} parent=19 // pred_region
        %p209 = scmp.lt.s32.totalorder %s20, 2
        %s210 = scalar_select %p209, %s20, 2
        %p211 = scmp.lt.s32.totalorder %s19, 1
        %s212 = scalar_select %p211, %s19, 1
        %s213 = smul.addr %s210, 2
        %s214 = sadd.s32 %s212, %s213
        %s215 = smul.addr %s214, 4
        %s216 = scalar_lea.vmem %s1, %s215
      $region28: #{tpu_custom_call.1} parent=19 // pred_fallthru
        _
      // Predicated region
      $region29: #{tpu_custom_call.1} parent=19 // pred_check
        %p217 = pneg %p98
      $region30: #{tpu_custom_call.1} parent=19 // pred_check_branch
        %219 = sbr.rel (%p217) target = $region32
      $region31: #{tpu_custom_call.1} parent=19 // pred_region
        %p220 = scmp.lt.s32.totalorder %s19, 1
        %s221 = scalar_select %p220, %s19, 1
        %s222 = smul.addr %s221, 8
        %s223 = scalar_lea.vmem %s2, %s222
      $region32: #{tpu_custom_call.1} parent=19 // pred_fallthru
        _
    $region20: #{tpu_custom_call.1} parent=5 // pred_fallthru
      _
    %p224 = scmp.le.s32.totalorder 1, %s12
    %p225 = scmp.lt.s32.totalorder %s12, 7
    %p226 = pnand %p224, %p225
    %p227 = pneg %p226
    // Predicated region
    $region33: #{tpu_custom_call.1} parent=5 // pred_check
      _
    $region34: #{tpu_custom_call.1} parent=5 // pred_check_branch
      %229 = sbr.rel (%p226) target = $region36
    $region35: #{tpu_custom_call.1} parent=5 // pred_region
      %s230 = ssub.s32 %s12, 1
      %p231 = scmp.lt.s32.totalorder %s21, 1
      %s232 = scalar_select %p231, %s21, 1
      %s233 = smul.addr %s232, 4
      %s234 = scalar_lea.vmem %s0, %s233
      %p235 = pneg %p50
      %p236 = pneg %p47
      %p237 = scmp.lt.s32.totalorder %s22, 2
      %s238 = scalar_select %p237, %s22, 2
      %p239 = scmp.lt.s32.totalorder %s21, 1
      %s240 = scalar_select %p239, %s21, 1
      %s241 = smul.addr %s238, 2
      %s242 = sadd.s32 %s240, %s241
      %s243 = smul.addr %s242, 4
      %s244 = scalar_lea.vmem %s1, %s243
      %p245 = pneg %p78
      %p246 = pneg %p75
      %p247 = scmp.lt.s32.totalorder %s21, 1
      %s248 = scalar_select %p247, %s21, 1
      %s249 = smul.addr %s248, 8
      %s250 = scalar_lea.vmem %s2, %s249
      %p251 = pneg %p104
      %p252 = pneg %p101
      %p253 = pneg %p125
      %p254 = pneg %p122
      %p255 = pneg %p151
      %p256 = pneg %p148
      %p257 = scmp.lt.s32.totalorder %s21, 1
      %s258 = scalar_select %p257, %s21, 1
      %s259 = scalar_lea.vmem %s4, %s258
      %p260 = pneg %p177
      %p261 = pneg %p174
      %p262 = scmp.lt.s32.totalorder %s21, 1
      %s263 = scalar_select %p262, %s21, 1
      %s264 = scalar_lea.vmem %s5, %s263
      %p265 = scmp.lt.s32.totalorder %s21, 1
      %s266 = scalar_select %p265, %s21, 1
      %s267 = smul.addr %s266, 4
      %s268 = scalar_lea.vmem %s0, %s267
      %p269 = scmp.lt.s32.totalorder %s22, 2
      %s270 = scalar_select %p269, %s22, 2
      %p271 = scmp.lt.s32.totalorder %s21, 1
      %s272 = scalar_select %p271, %s21, 1
      %s273 = smul.addr %s270, 2
      %s274 = sadd.s32 %s272, %s273
      %s275 = smul.addr %s274, 4
      %s276 = scalar_lea.vmem %s1, %s275
      %p277 = scmp.lt.s32.totalorder %s21, 1
      %s278 = scalar_select %p277, %s21, 1
      %s279 = smul.addr %s278, 8
      %s280 = scalar_lea.vmem %s2, %s279
      %p281 = scmp.lt.s32.totalorder %s21, 1
      %s282 = scalar_select %p281, %s21, 1
      %s283 = scalar_lea.vmem %s4, %s282
      %p284 = scmp.lt.s32.totalorder %s21, 1
      %s285 = scalar_select %p284, %s21, 1
      %s286 = scalar_lea.vmem %s5, %s285
      %v287 = vld [vmem:[%s3 + $0x2] sm:$0x1]
      %p288 = scmp.eq.s32.totalorder %s22, 0
      // Predicated region
      $region37: #{tpu_custom_call.1} parent=35 // pred_check
        %p289 = pneg %p288
      $region38: #{tpu_custom_call.1} parent=35 // pred_check_branch
        %291 = sbr.rel (%p289) target = $region40
      $region39: #{tpu_custom_call.1} parent=35 // pred_region
        %v292 = vld [vmem:[%s280] sm:$0xff]
        %v293 = vlaneseq
        %v294 = vand.u32 %v293, 127
        %295 = vset.pattern.permute.xlu0 0
        %296 = vperm.xlu0 %295, %v292
        %v297 = vpop.permute.xlu0 %296
        %vm298 = vcmp.eq.s32.totalorder %v294, %v297
        %v299 = vsel %vm298, 1, 0
        %v300 = vcvt.s32.f32 %v299
        %vm301 = vcmask 64512
        %302 = vst.msk [vmem:[#allocation2] sm:$0xff] %vm301, %v300
        %v303 = vld [vmem:[%s3] sm:$0x1]
        %v304 = vlaneseq
        %v305 = vshrl.u32 %v304, 7
        %v306 = vsub.s32 0, %v305
        %v307 = vrot.slane %v303, %v306
        %v308 = vmul.f32 %v300, %v307
        %309 = vst.msk [vmem:[#allocation3] sm:$0xff] %vm301, %v308
        %v310 = vlaneseq
        %v311 = vshrl.u32 %v310, 7
        %s312 = smul.u32 %s21, 8
        %v313 = vstv %s312
        %v314 = vadd.s32 %v313, %v311
        %vm315 = vcmp.lt.s32.totalorder %v314, 13
        %v316 = vsel %vm315, 1, 0
        %v317 = vcvt.s32.f32 %v316
        %vm318 = vcmask 7168
        %319 = vst.msk [vmem:[#allocation6] sm:$0xff] %vm318, %v317
        %v320 = vld [vmem:[%s3 + $0x1] sm:$0x1]
        %v321 = vlaneseq
        %v322 = vshrl.u32 %v321, 7
        %v323 = vsub.s32 0, %v322
        %v324 = vrot.slane %v320, %v323
        %v325 = vmul.f32 %v300, %v324
        %v326 = vsel %vm301, %v325, 0.0
        %327 = vadd.xlane.f32.xlu0 %v326
        %v328 = vpop.xlane.xlu0 %327
        %v329 = vmul.f32 %v317, %v328
        %330 = vst.msk [vmem:[#allocation5] sm:$0xff] %vm318, %v329
        %v331 = vld [vmem:[%s268] sm:$0xf]
        %v332 = vunpack.c.l.bf16 %v331
        %v333 = vlaneseq
        %v334 = vshrl.u32 %v333, 7
        %v335 = vsub.s32 0, %v334
        %v336 = vrot.slane %v287, %v335
        %v337 = vmul.f32 %v332, %v336
        %v338 = vsel %vm301, %v337, -inf
        %339 = vmax.xlane.f32.xlu0 %v338
        %v340 = vpop.xlane.xlu0 %339
        %v341 = vsub.f32 %v337, %v340
        %v342 = vmul.f32 %v341, 1.442695
        %v343 = vpow.pop %v342
        %v344 = vsel %vm301, %v343, 0.0
        %345 = vadd.xlane.f32.xlu0 %v344
        %v346 = vpop.xlane.xlu0 %345
        %v347 = vlog2.pop %v346
        %v348 = vmul.f32 %v347, 0.6931472
        %v349 = vrcp.pop %v346
        %v350 = vmul.f32 %v343, %v349
        %351 = vst.msk [vmem:[#allocation4] sm:$0xff] %vm301, %v350
        %v352 = vmul.f32 %v350, %v341
        %v353 = vsel %vm301, %v352, 0.0
        %354 = vadd.xlane.f32.xlu0 %v353
        %v355 = vpop.xlane.xlu0 %354
        %v356 = vsub.f32 %v355, %v348
        %v357 = vmul.f32 %v317, %v356
        %v358 = vsel %vm318, %v357, 0.0
        %359 = vadd.xlane.f32.xlu0 %v358
        %v360 = vpop.xlane.xlu0 %359
        %v361 = vrot.slane %v360, 4
        %v362 = vadd.f32 %v360, %v361
        %v363 = vrot.slane %v362, 2
        %v364 = vadd.f32 %v362, %v363
        %v365 = vrot.slane %v364, 1
        %v366 = vadd.f32 %v364, %v365
        %s367 = vtos %v366
        %v368 = vstv %s367
        %vm369 = vcmask 0
        %370 = vst.msk [vmem:[#allocation7] sm:$0x1] %vm369, %v368
        %371 = vst.msk [vmem:[#allocation8] sm:$0x1] %vm369, 0.0
        %372 = vst.msk [vmem:[#allocation9] sm:$0x1] %vm369, 0.0
      $region40: #{tpu_custom_call.1} parent=35 // pred_fallthru
        _
      %v373 = vld [vmem:[%s276] sm:$0xf]
      %v374 = vunpack.c.l.bf16 %v373
      %v375 = vld [vmem:[#allocation2] sm:$0xff]
      %v376 = vld [vmem:[#allocation6] sm:$0xff]
      %v377 = vld [vmem:[#allocation3] sm:$0xff]
      %v378 = vsub.f32 %v374, %v377
      %vm379 = vcmask 64512
      %v380 = vsel %vm379, %v378, -inf
      %381 = vmax.xlane.f32.xlu0 %v380
      %v382 = vpop.xlane.xlu0 %381
      %v383 = vsub.f32 %v378, %v382
      %v384 = vmul.f32 %v383, 1.442695
      %v385 = vpow.pop %v384
      %v386 = vsel %vm379, %v385, 0.0
      %387 = vadd.xlane.f32.xlu0 %v386
      %v388 = vpop.xlane.xlu0 %387
      %v389 = vlog2.pop %v388
      %v390 = vmul.f32 %v389, 0.6931472
      %v391 = vmul.f32 %v375, %v383
      %v392 = vsel %vm379, %v391, 0.0
      %393 = vadd.xlane.f32.xlu0 %v392
      %v394 = vpop.xlane.xlu0 %393
      %v395 = vsub.f32 %v390, %v394
      %v396 = vld [vmem:[#allocation8] sm:$0x1]
      %v397 = vld [vmem:[#allocation5] sm:$0xff]
      %v398 = vmul.f32 %v397, %v395
      %vm399 = vcmask 7168
      %v400 = vsel %vm399, %v398, 0.0
      %401 = vadd.xlane.f32.xlu0 %v400
      %v402 = vpop.xlane.xlu0 %401
      %v403 = vrot.slane %v402, 4
      %v404 = vadd.f32 %v402, %v403
      %v405 = vrot.slane %v404, 2
      %v406 = vadd.f32 %v404, %v405
      %v407 = vrot.slane %v406, 1
      %v408 = vadd.f32 %v406, %v407
      %s409 = vtos %v408
      %v410 = vstv %s409
      %v411 = vadd.f32 %v396, %v410
      %vm412 = vcmask 0
      %413 = vst.msk [vmem:[#allocation8] sm:$0x1] %vm412, %v411
      %v414 = vlaneseq
      %v415 = vshrl.u32 %v414, 7
      %v416 = vsub.s32 0, %v415
      %v417 = vrot.slane %v287, %v416
      %v418 = vmul.f32 %v374, %v417
      %v419 = vsel %vm379, %v418, -inf
      %420 = vmax.xlane.f32.xlu0 %v419
      %v421 = vpop.xlane.xlu0 %420
      %v422 = vsub.f32 %v418, %v421
      %v423 = vmul.f32 %v422, 1.442695
      %v424 = vpow.pop %v423
      %v425 = vsel %vm379, %v424, 0.0
      %426 = vadd.xlane.f32.xlu0 %v425
      %v427 = vpop.xlane.xlu0 %426
      %v428 = vlog2.pop %v427
      %v429 = vmul.f32 %v428, 0.6931472
      %v430 = vld [vmem:[#allocation4] sm:$0xff]
      %v431 = vmul.f32 %v430, %v422
      %v432 = vsel %vm379, %v431, 0.0
      %433 = vadd.xlane.f32.xlu0 %v432
      %v434 = vpop.xlane.xlu0 %433
      %v435 = vsub.f32 %v434, %v429
      %v436 = vmul.f32 %v376, %v435
      %v437 = vsel %vm399, %v436, 0.0
      %438 = vadd.xlane.f32.xlu0 %v437
      %v439 = vpop.xlane.xlu0 %438
      %v440 = vrot.slane %v439, 4
      %v441 = vadd.f32 %v439, %v440
      %v442 = vrot.slane %v441, 2
      %v443 = vadd.f32 %v441, %v442
      %v444 = vrot.slane %v443, 1
      %v445 = vadd.f32 %v443, %v444
      %s446 = vtos %v445
      %v447 = vld [vmem:[#allocation9] sm:$0x1]
      %v448 = vld [vmem:[#allocation7] sm:$0x1]
      %v449 = vstv %s446
      %v450 = vsub.f32 %v448, %v449
      %v451 = vadd.f32 %v447, %v450
      %452 = vst.msk [vmem:[#allocation9] sm:$0x1] %vm412, %v451
      %p453 = scmp.eq.s32.totalorder %s22, 2
      // Predicated region
      $region41: #{tpu_custom_call.1} parent=35 // pred_check
        %p454 = pneg %p453
      $region42: #{tpu_custom_call.1} parent=35 // pred_check_branch
        %456 = sbr.rel (%p454) target = $region44
      $region43: #{tpu_custom_call.1} parent=35 // pred_region
        %v457 = vld [vmem:[#allocation8] sm:$0x1]
        %458 = vst.msk [vmem:[%s283] sm:$0x1] %vm412, %v457
        %v459 = vld [vmem:[#allocation9] sm:$0x1]
        %460 = vst.msk [vmem:[%s286] sm:$0x1] %vm412, %v459
      $region44: #{tpu_custom_call.1} parent=35 // pred_fallthru
        _
      %p461 = scmp.lt.s32.totalorder %s21, 1
      %s462 = scalar_select %p461, %s21, 1
      %s463 = scalar_lea.vmem %s4, %s462
      %p464 = scmp.lt.s32.totalorder %s21, 1
      %s465 = scalar_select %p464, %s21, 1
      %s466 = scalar_lea.vmem %s5, %s465
      // Predicated region
      $region45: #{tpu_custom_call.1} parent=35 // pred_check
        %p467 = pneg %p148
      $region46: #{tpu_custom_call.1} parent=35 // pred_check_branch
        %469 = sbr.rel (%p467) target = $region48
      $region47: #{tpu_custom_call.1} parent=35 // pred_region
        _
      $region48: #{tpu_custom_call.1} parent=35 // pred_fallthru
        _
      // Predicated region
      $region49: #{tpu_custom_call.1} parent=35 // pred_check
        %p470 = pneg %p174
      $region50: #{tpu_custom_call.1} parent=35 // pred_check_branch
        %472 = sbr.rel (%p470) target = $region52
      $region51: #{tpu_custom_call.1} parent=35 // pred_region
        _
      $region52: #{tpu_custom_call.1} parent=35 // pred_fallthru
        _
    $region36: #{tpu_custom_call.1} parent=5 // pred_fallthru
      _
    %p473 = scmp.le.s32.totalorder 2, %s12
    // Predicated region
    $region53: #{tpu_custom_call.1} parent=5 // pred_check
      %p474 = pneg %p473
    $region54: #{tpu_custom_call.1} parent=5 // pred_check_branch
      %476 = sbr.rel (%p474) target = $region56
    $region55: #{tpu_custom_call.1} parent=5 // pred_region
      %s477 = ssub.s32 %s12, 2
      // Predicated region
      $region57: #{tpu_custom_call.1} parent=55 // pred_check
        %p478 = pneg %p154
      $region58: #{tpu_custom_call.1} parent=55 // pred_check_branch
        %480 = sbr.rel (%p478) target = $region60
      $region59: #{tpu_custom_call.1} parent=55 // pred_region
        %p481 = scmp.lt.s32.totalorder %s23, 1
        %s482 = scalar_select %p481, %s23, 1
        %s483 = scalar_lea.vmem %s4, %s482
      $region60: #{tpu_custom_call.1} parent=55 // pred_fallthru
        _
      // Predicated region
      $region61: #{tpu_custom_call.1} parent=55 // pred_check
        %p484 = pneg %p180
      $region62: #{tpu_custom_call.1} parent=55 // pred_check_branch
        %486 = sbr.rel (%p484) target = $region64
      $region63: #{tpu_custom_call.1} parent=55 // pred_region
        %p487 = scmp.lt.s32.totalorder %s23, 1
        %s488 = scalar_select %p487, %s23, 1
        %s489 = scalar_lea.vmem %s5, %s488
      $region64: #{tpu_custom_call.1} parent=55 // pred_fallthru
        _
    $region56: #{tpu_custom_call.1} parent=5 // pred_fallthru
      _
  $region6: #{tpu_custom_call.1} parent=0 // loop_footer
    %s16 = sadd.s32 1, %s12
  $region7: #{tpu_custom_call.1} parent=0 // loop_footer_branch
    %11 = sbr.rel target = $region3
  $region8: #{tpu_custom_call.1} parent=0 // loop_exit
    _

</llo_original>
